<compile_context>
chip_gen: v6e
topology: v6e:2x2x1
jax: 0.10.0
libtpu: 0.0.40
codegen_flags: <defaults>
</compile_context>

<pallas_src>
import math

import jax
import jax.numpy as jnp
from jax.experimental import pallas as pl
from jax.experimental.pallas import tpu as pltpu

_MIN_NORM = 1e-5      # expmap0 norm clamp (matches the reference implementation)
_EPS = 1e-5           # epsilon on the Mobius-addition denominator
_BLOCK_ROWS = 512     # row tile (multiple of 8); small enough for v7x's VMEM


# ---------------------------------------------------------------------------
# Kernel
# ---------------------------------------------------------------------------
def _poincare_mlr_kernel(c_ref, x_ref, pT_ref, aT_ref, o_ref):
    c = c_ref[0, 0]
    sqrt_c = jnp.sqrt(c)

    pT = pT_ref[...]     # (D, Cp)  raw p_vals, pre-transposed, class-padded
    aT = aT_ref[...]     # (D, Cp)  raw a_vals, pre-transposed, class-padded
    x = x_ref[...]       # (TM, D)  points on the Poincare ball

    # ---- per-class preprocessing (tiny: Cp x D) -------------------------
    # expmap0(p_vals, c)
    p_sq = jnp.sum(pT * pT, axis=0, keepdims=True)                 # (1, Cp)
    p_norm = jnp.maximum(jnp.sqrt(p_sq), _MIN_NORM)
    scale = jnp.tanh(jnp.clip(sqrt_c * p_norm, -15.0, 15.0)) / (sqrt_c * p_norm)
    pp = pT * scale                                                # p_poin^T (D, Cp)

    pp2 = jnp.sum(pp * pp, axis=0, keepdims=True)                  # |p_poin|^2
    beta = 1.0 - c * pp2                                           # conformal factor
    ap = aT * beta                                                 # a_poin^T (D, Cp)
    pa = jnp.sum(pp * ap, axis=0, keepdims=True)                   # <p_poin, a_poin>
    a_norm = jnp.sqrt(jnp.sum(ap * ap, axis=0, keepdims=True))     # |a_poin|
    k = (2.0 / beta) * a_norm / sqrt_c                             # (1, Cp)

    # ---- per-row work (lane-dense (TM, Cp)) ------------------------------
    x2 = jnp.sum(x * x, axis=-1, keepdims=True)                    # (TM, 1)
    xp = jnp.dot(x, pp, preferred_element_type=jnp.float32)        # <x, p_poin>
    xa = jnp.dot(x, ap, preferred_element_type=jnp.float32)        # <x, a_poin>

    # Factored Mobius addition m = (-p) (+)_c x :
    #   m = (alpha * (-p) + beta * x) / gamma
    alpha = 1.0 - 2.0 * c * xp + c * x2
    inv_g = 1.0 / (1.0 - 2.0 * c * xp + (c * c) * pp2 * x2 + _EPS)
    dot_ma = (beta * xa - alpha * pa) * inv_g                      # <m, a_poin>
    mob2 = (alpha * alpha * pp2 - 2.0 * alpha * beta * xp
            + beta * beta * x2) * (inv_g * inv_g)                  # |m|^2

    num = 2.0 * sqrt_c * dot_ma
    den = jnp.sqrt(mob2) * (1.0 - c * mob2)
    q = num / den
    logit = k * jnp.log(q + jnp.sqrt(1.0 + q * q))                 # arsinh
    o_ref[...] = logit.astype(o_ref.dtype)


# ---------------------------------------------------------------------------
# Wrapper
# ---------------------------------------------------------------------------
def _round_up(v, m):
    return (v + m - 1) // m * m


@jax.jit
def poincare_mlr_forward(x, a_vals, p_vals, c):
    orig_shape = x.shape
    D = orig_shape[-1]
    C = a_vals.shape[0]

    xm = x.reshape(-1, D).astype(jnp.float32)
    M = xm.shape[0]

    tm = min(_BLOCK_ROWS, _round_up(M, 8))
    M_pad = _round_up(M, tm)
    C_pad = _round_up(max(C, 128), 128)        # lane-dense output width

    if M_pad != M:
        xm = jnp.pad(xm, ((0, M_pad - M), (0, 0)))

    # One-time layout plumbing: pad class dim, transpose to MXU-native (D, C).
    # Padded (all-zero) classes yield finite zero logits and are sliced off.
    pT = jnp.pad(p_vals.astype(jnp.float32), ((0, C_pad - C), (0, 0))).T
    aT = jnp.pad(a_vals.astype(jnp.float32), ((0, C_pad - C), (0, 0))).T
    c_arr = jnp.asarray(c, jnp.float32).reshape(1, 1)

    out = pl.pallas_call(
        _poincare_mlr_kernel,
        out_shape=jax.ShapeDtypeStruct((M_pad, C_pad), jnp.float32),
        grid_spec=pltpu.PrefetchScalarGridSpec(
            num_scalar_prefetch=0,
            grid=(M_pad // tm,),
            in_specs=[
                pl.BlockSpec((1, 1), lambda i: (0, 0),
                             memory_space=pltpu.MemorySpace.SMEM),   # c (scalar)
                pl.BlockSpec((tm, D), lambda i: (i, 0)),             # x row tile
                pl.BlockSpec((D, C_pad), lambda i: (0, 0)),          # p^T (resident)
                pl.BlockSpec((D, C_pad), lambda i: (0, 0)),          # a^T (resident)
            ],
            out_specs=pl.BlockSpec((tm, C_pad), lambda i: (i, 0)),
        ),
        compiler_params=pltpu.CompilerParams(
            dimension_semantics=("parallel",),
            vmem_limit_bytes=32 * 1024 * 1024,
        ),
    )(c_arr, xm, pT, aT)

    return out[:M, :C].reshape(orig_shape[:-1] + (C,))


# ---------------------------------------------------------------------------
# Pure-JAX reference (literal translation of the PyTorch math) for checking
# ---------------------------------------------------------------------------
def _expmap0_ref(u, c):
    sqrt_c = jnp.sqrt(jnp.asarray(c, jnp.float32))
    u_norm = jnp.maximum(jnp.linalg.norm(u, axis=-1, keepdims=True), _MIN_NORM)
    return jnp.tanh(jnp.clip(sqrt_c * u_norm, -15.0, 15.0)) * u / (sqrt_c * u_norm)


def poincare_mlr_reference(x, a_vals, p_vals, c):
    c = jnp.asarray(c, jnp.float32)
    sqrt_c = jnp.sqrt(c)
    P = _expmap0_ref(p_vals, c)                                   # p_vals_poincare
    conformal = 1.0 - c * jnp.sum(P * P, axis=1, keepdims=True)
    A = a_vals * conformal                                        # a_vals_poincare
    X = x.reshape(-1, x.shape[-1])
    # _mobius_addition_batch(-P, X, c)
    xy = jnp.einsum("ij,kj->ik", -P, X)                           # (C, B)
    p2 = jnp.sum(P * P, axis=-1, keepdims=True)                   # (C, 1)
    y2 = jnp.sum(X * X, axis=-1, keepdims=True)                   # (B, 1)
    num = 1.0 + 2.0 * c * xy + c * y2.T                           # (C, B)
    num_vec = (num[:, :, None] * (-P)[:, None, :]
               + (1.0 - c * p2)[:, :, None] * X[None, :, :])      # (C, B, D)
    denom = 1.0 + 2.0 * c * xy + (c ** 2) * p2 * y2.T
    mob = num_vec / (denom[:, :, None] + _EPS)
    # _hyperbolic_softmax
    lam = 2.0 / (1.0 - c * jnp.sum(P * P, axis=1))
    k = lam * jnp.linalg.norm(A, axis=1) / sqrt_c
    num_l = 2.0 * sqrt_c * jnp.sum(mob * A[:, None, :], axis=-1)
    den_l = jnp.linalg.norm(mob, axis=2) * (1.0 - c * jnp.sum(mob * mob, axis=2))
    q = num_l / den_l
    logits = k[:, None] * jnp.log(q + jnp.sqrt(1.0 + q * q))      # arsinh
    return logits.T.reshape(x.shape[:-1] + (a_vals.shape[0],))


if __name__ == "__main__":
    key = jax.random.PRNGKey(0)
    k_x, k_a, k_p = jax.random.split(key, 3)

    batch, ball_dim, n_classes = 16, 32, 4
    c = 1.0

    # kaiming_uniform_(a=sqrt(5)) on an (n_classes, ball_dim) weight:
    # bound = sqrt(6 / ((1 + 5) * fan_in)) = 1 / sqrt(ball_dim)
    bound = 1.0 / math.sqrt(ball_dim)
    a_vals = jax.random.uniform(k_a, (n_classes, ball_dim), jnp.float32, -bound, bound)
    p_vals = jax.random.uniform(k_p, (n_classes, ball_dim), jnp.float32, -bound, bound)

    # Valid points on the Poincare ball: push tangent vectors through expmap0.
    v = 0.5 * jax.random.normal(k_x, (batch, ball_dim), jnp.float32)
    x = _expmap0_ref(v, c)

    out = poincare_mlr_forward(x, a_vals, p_vals, c)
    out = jax.block_until_ready(out)

    ref = poincare_mlr_reference(x, a_vals, p_vals, c)
    assert out.shape == (batch, n_classes), out.shape
    max_err = float(jnp.max(jnp.abs(out - ref)))
    assert jnp.allclose(out, ref, atol=1e-4, rtol=1e-4), (
        f"mismatch vs reference, max abs err={max_err}")

    print("KERNEL_OK")
</pallas_src>

<mosaic_0001>
module attributes {stable_mosaic.version = 11 : i64} {
  func.func @_poincare_mlr_kernel(%arg0: i32, %arg1: memref<1x1xf32, #tpu.memory_space<smem>>, %arg2: memref<16x32xf32, #tpu.memory_space<vmem>>, %arg3: memref<32x128xf32, #tpu.memory_space<vmem>>, %arg4: memref<32x128xf32, #tpu.memory_space<vmem>>, %arg5: memref<16x128xf32, #tpu.memory_space<vmem>>) attributes {dimension_semantics = [#tpu.dimension_semantics<parallel>], iteration_bounds = array<i64: 1>, scalar_prefetch = 0 : i64, scratch_operands = 0 : i64, tpu.core_type = #tpu.core_type<tc>, window_params = [{transform_indices = @transform_0, window_bounds = array<i64: 1, 1>}, {transform_indices = @transform_1, window_bounds = array<i64: 16, 32>}, {pipeline_mode = #tpu.pipeline_mode<synchronous>, transform_indices = @transform_2, window_bounds = array<i64: 32, 128>}, {pipeline_mode = #tpu.pipeline_mode<synchronous>, transform_indices = @transform_3, window_bounds = array<i64: 32, 128>}, {transform_indices = @transform_4, window_bounds = array<i64: 16, 128>}]} {
    %c0 = arith.constant 0 : index
    %c0_0 = arith.constant 0 : index
    %0 = memref.load %arg1[%c0, %c0_0] : memref<1x1xf32, #tpu.memory_space<smem>>
    %1 = math.sqrt %0 : f32
    %c0_1 = arith.constant 0 : index
    %c0_2 = arith.constant 0 : index
    %2 = vector.load %arg3[%c0_1, %c0_2] : memref<32x128xf32, #tpu.memory_space<vmem>>, vector<32x128xf32>
    %c0_3 = arith.constant 0 : index
    %c0_4 = arith.constant 0 : index
    %3 = vector.load %arg4[%c0_3, %c0_4] : memref<32x128xf32, #tpu.memory_space<vmem>>, vector<32x128xf32>
    %c0_5 = arith.constant 0 : index
    %c0_6 = arith.constant 0 : index
    %4 = vector.load %arg2[%c0_5, %c0_6] : memref<16x32xf32, #tpu.memory_space<vmem>>, vector<16x32xf32>
    %5 = arith.mulf %2, %2 : vector<32x128xf32>
    %cst = arith.constant dense<0.000000e+00> : vector<128xf32>
    %6 = vector.multi_reduction <add>, %5, %cst [0] : vector<32x128xf32> to vector<128xf32>
    %7 = vector.shape_cast %6 : vector<128xf32> to vector<1x128xf32>
    %8 = math.sqrt %7 : vector<1x128xf32>
    %cst_7 = arith.constant 9.99999974E-6 : f32
    %9 = vector.broadcast %cst_7 : f32 to vector<1x128xf32>
    %10 = arith.maximumf %8, %9 : vector<1x128xf32>
    %11 = vector.broadcast %1 : f32 to vector<1x128xf32>
    %12 = arith.mulf %11, %10 : vector<1x128xf32>
    %cst_8 = arith.constant -1.500000e+01 : f32
    %cst_9 = arith.constant 1.500000e+01 : f32
    %13 = vector.broadcast %cst_8 : f32 to vector<1x128xf32>
    %14 = arith.maximumf %13, %12 : vector<1x128xf32>
    %15 = vector.broadcast %cst_9 : f32 to vector<1x128xf32>
    %16 = arith.minimumf %15, %14 : vector<1x128xf32>
    %17 = math.tanh %16 : vector<1x128xf32>
    %18 = vector.broadcast %1 : f32 to vector<1x128xf32>
    %19 = arith.mulf %18, %10 : vector<1x128xf32>
    %20 = arith.divf %17, %19 : vector<1x128xf32>
    %21 = vector.broadcast %20 : vector<1x128xf32> to vector<32x128xf32>
    %22 = arith.mulf %2, %21 : vector<32x128xf32>
    %23 = arith.mulf %22, %22 : vector<32x128xf32>
    %cst_10 = arith.constant dense<0.000000e+00> : vector<128xf32>
    %24 = vector.multi_reduction <add>, %23, %cst_10 [0] : vector<32x128xf32> to vector<128xf32>
    %25 = vector.shape_cast %24 : vector<128xf32> to vector<1x128xf32>
    %26 = vector.broadcast %0 : f32 to vector<1x128xf32>
    %27 = arith.mulf %26, %25 : vector<1x128xf32>
    %cst_11 = arith.constant 1.000000e+00 : f32
    %28 = vector.broadcast %cst_11 : f32 to vector<1x128xf32>
    %29 = arith.subf %28, %27 : vector<1x128xf32>
    %30 = vector.broadcast %29 : vector<1x128xf32> to vector<32x128xf32>
    %31 = arith.mulf %3, %30 : vector<32x128xf32>
    %32 = arith.mulf %22, %31 : vector<32x128xf32>
    %cst_12 = arith.constant dense<0.000000e+00> : vector<128xf32>
    %33 = vector.multi_reduction <add>, %32, %cst_12 [0] : vector<32x128xf32> to vector<128xf32>
    %34 = vector.shape_cast %33 : vector<128xf32> to vector<1x128xf32>
    %35 = arith.mulf %31, %31 : vector<32x128xf32>
    %cst_13 = arith.constant dense<0.000000e+00> : vector<128xf32>
    %36 = vector.multi_reduction <add>, %35, %cst_13 [0] : vector<32x128xf32> to vector<128xf32>
    %37 = vector.shape_cast %36 : vector<128xf32> to vector<1x128xf32>
    %38 = math.sqrt %37 : vector<1x128xf32>
    %cst_14 = arith.constant 2.000000e+00 : f32
    %39 = vector.broadcast %cst_14 : f32 to vector<1x128xf32>
    %40 = arith.divf %39, %29 : vector<1x128xf32>
    %41 = arith.mulf %40, %38 : vector<1x128xf32>
    %42 = vector.broadcast %1 : f32 to vector<1x128xf32>
    %43 = arith.divf %41, %42 : vector<1x128xf32>
    %44 = arith.mulf %4, %4 : vector<16x32xf32>
    %cst_15 = arith.constant dense<0.000000e+00> : vector<16xf32>
    %45 = vector.multi_reduction <add>, %44, %cst_15 [1] : vector<16x32xf32> to vector<16xf32>
    %46 = vector.shape_cast %45 : vector<16xf32> to vector<16x1xf32>
    %cst_16 = arith.constant dense<0.000000e+00> : vector<16x128xf32>
    %47 = tpu.matmul %4, %22, %cst_16 {dimension_numbers = #tpu.dot_dimension_numbers<[1], [0], [0], [1], [0, 0, 1, 1], [], []>} : vector<16x32xf32>, vector<32x128xf32>, vector<16x128xf32> -> vector<16x128xf32>
    %cst_17 = arith.constant dense<0.000000e+00> : vector<16x128xf32>
    %48 = tpu.matmul %4, %31, %cst_17 {dimension_numbers = #tpu.dot_dimension_numbers<[1], [0], [0], [1], [0, 0, 1, 1], [], []>} : vector<16x32xf32>, vector<32x128xf32>, vector<16x128xf32> -> vector<16x128xf32>
    %cst_18 = arith.constant 2.000000e+00 : f32
    %49 = arith.mulf %cst_18, %0 : f32
    %50 = vector.broadcast %49 : f32 to vector<16x128xf32>
    %51 = arith.mulf %50, %47 : vector<16x128xf32>
    %cst_19 = arith.constant 1.000000e+00 : f32
    %52 = vector.broadcast %cst_19 : f32 to vector<16x128xf32>
    %53 = arith.subf %52, %51 : vector<16x128xf32>
    %54 = vector.broadcast %0 : f32 to vector<16x1xf32>
    %55 = arith.mulf %54, %46 : vector<16x1xf32>
    %56 = vector.broadcast %55 : vector<16x1xf32> to vector<16x128xf32>
    %57 = arith.addf %53, %56 : vector<16x128xf32>
    %cst_20 = arith.constant 2.000000e+00 : f32
    %58 = arith.mulf %cst_20, %0 : f32
    %59 = vector.broadcast %58 : f32 to vector<16x128xf32>
    %60 = arith.mulf %59, %47 : vector<16x128xf32>
    %cst_21 = arith.constant 1.000000e+00 : f32
    %61 = vector.broadcast %cst_21 : f32 to vector<16x128xf32>
    %62 = arith.subf %61, %60 : vector<16x128xf32>
    %63 = arith.mulf %0, %0 : f32
    %64 = vector.broadcast %63 : f32 to vector<1x128xf32>
    %65 = arith.mulf %64, %25 : vector<1x128xf32>
    %66 = vector.broadcast %65 : vector<1x128xf32> to vector<16x128xf32>
    %67 = vector.broadcast %46 : vector<16x1xf32> to vector<16x128xf32>
    %68 = arith.mulf %66, %67 : vector<16x128xf32>
    %69 = arith.addf %62, %68 : vector<16x128xf32>
    %cst_22 = arith.constant 9.99999974E-6 : f32
    %70 = vector.broadcast %cst_22 : f32 to vector<16x128xf32>
    %71 = arith.addf %69, %70 : vector<16x128xf32>
    %cst_23 = arith.constant 1.000000e+00 : f32
    %72 = vector.broadcast %cst_23 : f32 to vector<16x128xf32>
    %73 = arith.divf %72, %71 : vector<16x128xf32>
    %74 = vector.broadcast %29 : vector<1x128xf32> to vector<16x128xf32>
    %75 = arith.mulf %74, %48 : vector<16x128xf32>
    %76 = vector.broadcast %34 : vector<1x128xf32> to vector<16x128xf32>
    %77 = arith.mulf %57, %76 : vector<16x128xf32>
    %78 = arith.subf %75, %77 : vector<16x128xf32>
    %79 = arith.mulf %78, %73 : vector<16x128xf32>
    %80 = arith.mulf %57, %57 : vector<16x128xf32>
    %81 = vector.broadcast %25 : vector<1x128xf32> to vector<16x128xf32>
    %82 = arith.mulf %80, %81 : vector<16x128xf32>
    %cst_24 = arith.constant 2.000000e+00 : f32
    %83 = vector.broadcast %cst_24 : f32 to vector<16x128xf32>
    %84 = arith.mulf %83, %57 : vector<16x128xf32>
    %85 = vector.broadcast %29 : vector<1x128xf32> to vector<16x128xf32>
    %86 = arith.mulf %84, %85 : vector<16x128xf32>
    %87 = arith.mulf %86, %47 : vector<16x128xf32>
    %88 = arith.subf %82, %87 : vector<16x128xf32>
    %89 = arith.mulf %29, %29 : vector<1x128xf32>
    %90 = vector.broadcast %89 : vector<1x128xf32> to vector<16x128xf32>
    %91 = vector.broadcast %46 : vector<16x1xf32> to vector<16x128xf32>
    %92 = arith.mulf %90, %91 : vector<16x128xf32>
    %93 = arith.addf %88, %92 : vector<16x128xf32>
    %94 = arith.mulf %73, %73 : vector<16x128xf32>
    %95 = arith.mulf %93, %94 : vector<16x128xf32>
    %cst_25 = arith.constant 2.000000e+00 : f32
    %96 = arith.mulf %cst_25, %1 : f32
    %97 = vector.broadcast %96 : f32 to vector<16x128xf32>
    %98 = arith.mulf %97, %79 : vector<16x128xf32>
    %99 = math.sqrt %95 : vector<16x128xf32>
    %100 = vector.broadcast %0 : f32 to vector<16x128xf32>
    %101 = arith.mulf %100, %95 : vector<16x128xf32>
    %cst_26 = arith.constant 1.000000e+00 : f32
    %102 = vector.broadcast %cst_26 : f32 to vector<16x128xf32>
    %103 = arith.subf %102, %101 : vector<16x128xf32>
    %104 = arith.mulf %99, %103 : vector<16x128xf32>
    %105 = arith.divf %98, %104 : vector<16x128xf32>
    %106 = arith.mulf %105, %105 : vector<16x128xf32>
    %cst_27 = arith.constant 1.000000e+00 : f32
    %107 = vector.broadcast %cst_27 : f32 to vector<16x128xf32>
    %108 = arith.addf %107, %106 : vector<16x128xf32>
    %109 = math.sqrt %108 : vector<16x128xf32>
    %110 = arith.addf %105, %109 : vector<16x128xf32>
    %111 = math.log %110 : vector<16x128xf32>
    %112 = vector.broadcast %43 : vector<1x128xf32> to vector<16x128xf32>
    %113 = arith.mulf %112, %111 : vector<16x128xf32>
    %c0_28 = arith.constant 0 : index
    %c0_29 = arith.constant 0 : index
    %114 = vector.load %arg5[%c0_28, %c0_29] : memref<16x128xf32, #tpu.memory_space<vmem>>, vector<16x128xf32>
    tpu.vector_store %arg5[%c0_28, %c0_29], %113 {strides = array<i32>} : memref<16x128xf32, #tpu.memory_space<vmem>>, vector<16x128xf32>,
    return
  }
  func.func @transform_0(%arg0: i32) -> (i32, i32) {
    %c0_i32 = arith.constant 0 : i32
    %c0_i32_0 = arith.constant 0 : i32
    %c0_i32_1 = arith.constant 0 : i32
    return %c0_i32, %c0_i32_0 : i32, i32
  }
  func.func @transform_1(%arg0: i32) -> (i32, i32) {
    %c0_i32 = arith.constant 0 : i32
    %c0_i32_0 = arith.constant 0 : i32
    return %arg0, %c0_i32 : i32, i32
  }
  func.func @transform_2(%arg0: i32) -> (i32, i32) {
    %c0_i32 = arith.constant 0 : i32
    %c0_i32_0 = arith.constant 0 : i32
    %c0_i32_1 = arith.constant 0 : i32
    return %c0_i32, %c0_i32_0 : i32, i32
  }
  func.func @transform_3(%arg0: i32) -> (i32, i32) {
    %c0_i32 = arith.constant 0 : i32
    %c0_i32_0 = arith.constant 0 : i32
    %c0_i32_1 = arith.constant 0 : i32
    return %c0_i32, %c0_i32_0 : i32, i32
  }
  func.func @transform_4(%arg0: i32) -> (i32, i32) {
    %c0_i32 = arith.constant 0 : i32
    %c0_i32_0 = arith.constant 0 : i32
    return %arg0, %c0_i32 : i32, i32
  }
}

</mosaic_0001>

<llo_original>
// kernel: poincare_mlr_forward.1
$region0: #{poincare_mlr_forward.1}
  #allocation0 [shape = 'u32[]', space=smem, size = 0x4, offset = 0x4, fixed_abs, tag = 'smem constant byte address 0x4 - core index']
  #allocation1 [shape = 'u32[144,128]{1,0:T(1,128)}', space=vmem, size = 0x12000, scoped, tag = 'internal scratch']
  #allocation2 [shape = 'f32[1,1]{1,0:T(1,128)S(6)}', space=smem, size = 0x200, scoped, tag = 'scoped memory for poincare_mlr_forward.1']
  %s0 = inlined_call_operand.<no memory space> [shape: f32[1,1], index: 0, kind: input, shape index: {}]
  %s1 = inlined_call_operand.vmem [shape: f32[16,32], index: 1, kind: input, shape index: {}]
  %s2 = inlined_call_operand.vmem [shape: f32[32,128], index: 2, kind: input, shape index: {}]
  %s3 = inlined_call_operand.vmem [shape: f32[32,128], index: 3, kind: input, shape index: {}]
  %s4 = inlined_call_operand.vmem [shape: f32[16,128], index: 4, kind: output, shape index: {}]
  %s5 = sld [smem:[#allocation0]]
  $region26: #{poincare_mlr_forward.1} parent=0
    _
  %s7 = ssub.s32 1, %s5
  %s8 = scalar_select 0, %s7, %s5
  %9 = sst [smem:[#allocation2]] %s0
  // Predicated region
  $region2: #{poincare_mlr_forward.1} parent=0 // pred_check
    _
  $region3: #{poincare_mlr_forward.1} parent=0 // pred_check_branch
    %11 = sbr.rel (0) target = $region5
  $region4: #{poincare_mlr_forward.1} parent=0 // pred_region
    _
  $region5: #{poincare_mlr_forward.1} parent=0 // pred_fallthru
    _
  // Predicated region
  $region6: #{poincare_mlr_forward.1} parent=0 // pred_check
    _
  $region7: #{poincare_mlr_forward.1} parent=0 // pred_check_branch
    %13 = sbr.rel (0) target = $region9
  $region8: #{poincare_mlr_forward.1} parent=0 // pred_region
    _
  $region9: #{poincare_mlr_forward.1} parent=0 // pred_fallthru
    _
  // Predicated region
  $region10: #{poincare_mlr_forward.1} parent=0 // pred_check
    _
  $region11: #{poincare_mlr_forward.1} parent=0 // pred_check_branch
    %15 = sbr.rel (0) target = $region13
  $region12: #{poincare_mlr_forward.1} parent=0 // pred_region
    _
  $region13: #{poincare_mlr_forward.1} parent=0 // pred_fallthru
    _
  // Predicated region
  $region14: #{poincare_mlr_forward.1} parent=0 // pred_check
    _
  $region15: #{poincare_mlr_forward.1} parent=0 // pred_check_branch
    %17 = sbr.rel (0) target = $region17
  $region16: #{poincare_mlr_forward.1} parent=0 // pred_region
    _
  $region17: #{poincare_mlr_forward.1} parent=0 // pred_fallthru
    _
  %s18 = sld [smem:[#allocation2]]
  %v19 = vstv %s18
  %v20 = vrsqrt.pop %v19
  %v21 = vmul.f32 %v19, %v20
  %vm22 = vcmp.eq.f32.partialorder %v19, inf
  %v23 = vsel %vm22, %v19, %v21
  %vm24 = vcmp.eq.f32.partialorder %v19, 0.0
  %v25 = vand.u32 %v19, 2147483648
  %v26 = vsel %vm24, %v25, %v23
  %s27 = vtos %v26
  %v28 = vld [vmem:[%s2] sm:$0xff]
  %v29 = vld [vmem:[%s2 + $0x8] sm:$0xff]
  %v30 = vld [vmem:[%s2 + $0x10] sm:$0xff]
  %v31 = vld [vmem:[%s2 + $0x18] sm:$0xff]
  %v32 = vld [vmem:[%s3] sm:$0xff]
  %v33 = vld [vmem:[%s3 + $0x8] sm:$0xff]
  %v34 = vld [vmem:[%s3 + $0x10] sm:$0xff]
  %v35 = vld [vmem:[%s3 + $0x18] sm:$0xff]
  %v36 = vld [vmem:[%s1] sm:$0xff]
  %v37 = vld [vmem:[%s1 + $0x8] sm:$0xff]
  %v38 = vmul.f32 %v28, %v28
  %v39 = vmul.f32 %v29, %v29
  %v40 = vmul.f32 %v30, %v30
  %v41 = vmul.f32 %v31, %v31
  %v42 = vadd.f32 %v38, %v39
  %v43 = vadd.f32 %v42, %v40
  %v44 = vadd.f32 %v43, %v41
  %v45 = vrot.slane %v44, 4
  %v46 = vadd.f32 %v44, %v45
  %v47 = vrot.slane %v46, 2
  %v48 = vadd.f32 %v46, %v47
  %v49 = vrot.slane %v48, 1
  %v50 = vadd.f32 %v48, %v49
  %v51 = vrsqrt.pop %v50
  %v52 = vmul.f32 %v50, %v51
  %vm53 = vcmp.eq.f32.partialorder %v50, inf
  %v54 = vsel %vm53, %v50, %v52
  %vm55 = vcmp.eq.f32.partialorder %v50, 0.0
  %v56 = vand.u32 %v50, 2147483648
  %v57 = vsel %vm55, %v56, %v54
  %v58 = vmax.f32 %v57, 1e-05
  %v59 = vstv %s27
  %v60 = vmul.f32 %v59, %v58
  %v61 = vmax.f32 %v60, -15.0
  %v62 = vmin.f32 %v61, 15.0
  %v63 = vtanh.pop %v62
  %v64 = vrcp.pop %v60
  %v65 = vmul.f32 %v63, %v64
  %v66 = vmul.f32 %v28, %v65
  %v67 = vmul.f32 %v29, %v65
  %v68 = vmul.f32 %v30, %v65
  %v69 = vmul.f32 %v31, %v65
  %v70 = vmul.f32 %v66, %v66
  %v71 = vmul.f32 %v67, %v67
  %v72 = vmul.f32 %v68, %v68
  %v73 = vmul.f32 %v69, %v69
  %v74 = vadd.f32 %v70, %v71
  %v75 = vadd.f32 %v74, %v72
  %v76 = vadd.f32 %v75, %v73
  %v77 = vrot.slane %v76, 4
  %v78 = vadd.f32 %v76, %v77
  %v79 = vrot.slane %v78, 2
  %v80 = vadd.f32 %v78, %v79
  %v81 = vrot.slane %v80, 1
  %v82 = vadd.f32 %v80, %v81
  %v83 = vstv %s18
  %v84 = vmul.f32 %v83, %v82
  %v85 = vsub.f32 1.0, %v84
  %v86 = vmul.f32 %v32, %v85
  %v87 = vmul.f32 %v33, %v85
  %v88 = vmul.f32 %v34, %v85
  %v89 = vmul.f32 %v35, %v85
  %v90 = vmul.f32 %v66, %v86
  %v91 = vmul.f32 %v67, %v87
  %v92 = vmul.f32 %v68, %v88
  %v93 = vmul.f32 %v69, %v89
  %v94 = vadd.f32 %v90, %v91
  %v95 = vadd.f32 %v94, %v92
  %v96 = vadd.f32 %v95, %v93
  %v97 = vrot.slane %v96, 4
  %v98 = vadd.f32 %v96, %v97
  %v99 = vrot.slane %v98, 2
  %v100 = vadd.f32 %v98, %v99
  %v101 = vrot.slane %v100, 1
  %v102 = vadd.f32 %v100, %v101
  %v103 = vmul.f32 %v86, %v86
  %v104 = vmul.f32 %v87, %v87
  %v105 = vmul.f32 %v88, %v88
  %v106 = vmul.f32 %v89, %v89
  %v107 = vadd.f32 %v103, %v104
  %v108 = vadd.f32 %v107, %v105
  %v109 = vadd.f32 %v108, %v106
  %v110 = vrot.slane %v109, 4
  %v111 = vadd.f32 %v109, %v110
  %v112 = vrot.slane %v111, 2
  %v113 = vadd.f32 %v111, %v112
  %v114 = vrot.slane %v113, 1
  %v115 = vadd.f32 %v113, %v114
  %v116 = vrsqrt.pop %v115
  %v117 = vmul.f32 %v115, %v116
  %vm118 = vcmp.eq.f32.partialorder %v115, inf
  %v119 = vsel %vm118, %v115, %v117
  %vm120 = vcmp.eq.f32.partialorder %v115, 0.0
  %v121 = vand.u32 %v115, 2147483648
  %v122 = vsel %vm120, %v121, %v119
  %v123 = vrcp.pop %v85
  %v124 = vmul.f32 2.0, %v123
  %v125 = vmul.f32 %v124, %v122
  %v126 = vrcp.pop %v59
  %v127 = vmul.f32 %v125, %v126
  %v128 = vmul.f32 %v36, %v36
  %v129 = vmul.f32 %v37, %v37
  %vm130 = vcmask 261120
  %v131 = vsel %vm130, %v128, 0.0
  %132 = vadd.xlane.f32.xlu0 %v131
  %v133 = vpop.xlane.xlu0 %132
  %v134 = vsel %vm130, %v129, 0.0
  %135 = vadd.xlane.f32.xlu0 %v134
  %v136 = vpop.xlane.xlu0 %135
  %v138 = vsel %vm130, %v36, 0
  %v141 = vsel %vm130, %v37, 0
  %143 = vmatprep.subr.mxu0 0.0
  %144 = vmatpush1.msra.mxu0 0.0
  %145 = vmatprep.subr.mxu0 0.0
  %146 = vmatpush1.msra.mxu0 0.0
  %147 = vmatprep.subr.mxu0 0.0
  %148 = vmatpush1.msra.mxu0 0.0
  %149 = vmatprep.subr.mxu0 0.0
  %150 = vmatpush1.msra.mxu0 0.0
  %151 = vmatprep.subr.mxu0 0.0
  %152 = vmatpush1.msra.mxu0 0.0
  %153 = vmatprep.subr.mxu0 0.0
  %154 = vmatpush1.msra.mxu0 0.0
  %155 = vmatprep.subr.mxu0 0.0
  %156 = vmatpush1.msra.mxu0 0.0
  %157 = vmatprep.subr.mxu0 0.0
  %158 = vmatpush1.msra.mxu0 0.0
  %159 = vmatprep.subr.mxu0 0.0
  %160 = vmatpush1.msra.mxu0 0.0
  %161 = vmatprep.subr.mxu0 0.0
  %162 = vmatpush1.msra.mxu0 0.0
  %163 = vmatprep.subr.mxu0 0.0
  %164 = vmatpush1.msra.mxu0 0.0
  %165 = vmatprep.subr.mxu0 0.0
  %166 = vmatpush1.msra.mxu0 0.0
  %167 = vmatprep.subr.mxu0 0.0
  %168 = vmatpush1.msra.mxu0 %v69
  %169 = vmatprep.subr.mxu0 0.0
  %170 = vmatpush1.msra.mxu0 %v68
  %171 = vmatprep.subr.mxu0 0.0
  %172 = vmatpush1.msra.mxu0 %v67
  %173 = vmatprep.subr.mxu0 0.0
  %174 = vmatpush1.msra.mxu0 %v66
  %175 = vmatprep.subr.mxu0 0.0
  %176 = vmatpush2.msra.mxu0 0.0
  %177 = vmatprep.subr.mxu0 0.0
  %178 = vmatpush2.msra.mxu0 0.0
  %179 = vmatprep.subr.mxu0 0.0
  %180 = vmatpush2.msra.mxu0 0.0
  %181 = vmatprep.subr.mxu0 0.0
  %182 = vmatpush2.msra.mxu0 0.0
  %183 = vmatprep.subr.mxu0 0.0
  %184 = vmatpush2.msra.mxu0 0.0
  %185 = vmatprep.subr.mxu0 0.0
  %186 = vmatpush2.msra.mxu0 0.0
  %187 = vmatprep.subr.mxu0 0.0
  %188 = vmatpush2.msra.mxu0 0.0
  %189 = vmatprep.subr.mxu0 0.0
  %190 = vmatpush2.msra.mxu0 0.0
  %191 = vmatprep.subr.mxu0 0.0
  %192 = vmatpush2.msra.mxu0 0.0
  %193 = vmatprep.subr.mxu0 0.0
  %194 = vmatpush2.msra.mxu0 0.0
  %195 = vmatprep.subr.mxu0 0.0
  %196 = vmatpush2.msra.mxu0 0.0
  %197 = vmatprep.subr.mxu0 0.0
  %198 = vmatpush2.msra.mxu0 0.0
  %199 = vmatprep.subr.mxu0 0.0
  %200 = vmatpush2.msra.mxu0 0.0
  %201 = vmatprep.subr.mxu0 0.0
  %202 = vmatpush2.msra.mxu0 0.0
  %203 = vmatprep.subr.mxu0 0.0
  %204 = vmatpush2.msra.mxu0 0.0
  %205 = vmatprep.subr.mxu0 0.0
  %206 = vmatpush2.msra.mxu0 0.0
  %207 = vmatprep.mubr.f32.mxu0 0.0
  %208 = vmatmul.mubr.f32.gmra.mxu0 %v138
  %v209 = vpop.f32.mrf.mxu0
  %v210 = vadd.f32 0.0, %v209
  %v211 = vpop.f32.mrf.mxu0
  %212 = vmatprep.mubr.f32.mxu0 0.0
  %213 = vmatmul.mubr.f32.gmra.mxu0 %v141
  %v214 = vpop.f32.mrf.mxu0
  %v215 = vadd.f32 0.0, %v214
  %v216 = vpop.f32.mrf.mxu0
  %217 = vdwg.mxu0
  %218 = vmatprep.subr.mxu0 0.0
  %219 = vmatpush1.msra.mxu0 0.0
  %220 = vmatprep.subr.mxu0 0.0
  %221 = vmatpush1.msra.mxu0 0.0
  %222 = vmatprep.subr.mxu0 0.0
  %223 = vmatpush1.msra.mxu0 0.0
  %224 = vmatprep.subr.mxu0 0.0
  %225 = vmatpush1.msra.mxu0 0.0
  %226 = vmatprep.subr.mxu0 0.0
  %227 = vmatpush1.msra.mxu0 0.0
  %228 = vmatprep.subr.mxu0 0.0
  %229 = vmatpush1.msra.mxu0 0.0
  %230 = vmatprep.subr.mxu0 0.0
  %231 = vmatpush1.msra.mxu0 0.0
  %232 = vmatprep.subr.mxu0 0.0
  %233 = vmatpush1.msra.mxu0 0.0
  %234 = vmatprep.subr.mxu0 0.0
  %235 = vmatpush1.msra.mxu0 0.0
  %236 = vmatprep.subr.mxu0 0.0
  %237 = vmatpush1.msra.mxu0 0.0
  %238 = vmatprep.subr.mxu0 0.0
  %239 = vmatpush1.msra.mxu0 0.0
  %240 = vmatprep.subr.mxu0 0.0
  %241 = vmatpush1.msra.mxu0 0.0
  %242 = vmatprep.subr.mxu0 0.0
  %243 = vmatpush1.msra.mxu0 %v89
  %244 = vmatprep.subr.mxu0 0.0
  %245 = vmatpush1.msra.mxu0 %v88
  %246 = vmatprep.subr.mxu0 0.0
  %247 = vmatpush1.msra.mxu0 %v87
  %248 = vmatprep.subr.mxu0 0.0
  %249 = vmatpush1.msra.mxu0 %v86
  %250 = vmatprep.subr.mxu0 0.0
  %251 = vmatpush2.msra.mxu0 0.0
  %252 = vmatprep.subr.mxu0 0.0
  %253 = vmatpush2.msra.mxu0 0.0
  %254 = vmatprep.subr.mxu0 0.0
  %255 = vmatpush2.msra.mxu0 0.0
  %256 = vmatprep.subr.mxu0 0.0
  %257 = vmatpush2.msra.mxu0 0.0
  %258 = vmatprep.subr.mxu0 0.0
  %259 = vmatpush2.msra.mxu0 0.0
  %260 = vmatprep.subr.mxu0 0.0
  %261 = vmatpush2.msra.mxu0 0.0
  %262 = vmatprep.subr.mxu0 0.0
  %263 = vmatpush2.msra.mxu0 0.0
  %264 = vmatprep.subr.mxu0 0.0
  %265 = vmatpush2.msra.mxu0 0.0
  %266 = vmatprep.subr.mxu0 0.0
  %267 = vmatpush2.msra.mxu0 0.0
  %268 = vmatprep.subr.mxu0 0.0
  %269 = vmatpush2.msra.mxu0 0.0
  %270 = vmatprep.subr.mxu0 0.0
  %271 = vmatpush2.msra.mxu0 0.0
  %272 = vmatprep.subr.mxu0 0.0
  %273 = vmatpush2.msra.mxu0 0.0
  %274 = vmatprep.subr.mxu0 0.0
  %275 = vmatpush2.msra.mxu0 0.0
  %276 = vmatprep.subr.mxu0 0.0
  %277 = vmatpush2.msra.mxu0 0.0
  %278 = vmatprep.subr.mxu0 0.0
  %279 = vmatpush2.msra.mxu0 0.0
  %280 = vmatprep.subr.mxu0 0.0
  %281 = vmatpush2.msra.mxu0 0.0
  %282 = vmatprep.mubr.f32.mxu0 0.0
  %283 = vmatmul.mubr.f32.gmra.mxu0 %v138
  %v284 = vpop.f32.mrf.mxu0
  %v285 = vadd.f32 0.0, %v284
  %v286 = vpop.f32.mrf.mxu0
  %287 = vmatprep.mubr.f32.mxu0 0.0
  %288 = vmatmul.mubr.f32.gmra.mxu0 %v141
  %v289 = vpop.f32.mrf.mxu0
  %v290 = vadd.f32 0.0, %v289
  %v291 = vpop.f32.mrf.mxu0
  %292 = vdwg.mxu0
  %s293 = smul.f32 %s18, 2.0
  %v294 = vstv %s293
  %v295 = vmul.f32 %v294, %v210
  %v296 = vmul.f32 %v294, %v215
  %v297 = vsub.f32 1.0, %v295
  %v298 = vsub.f32 1.0, %v296
  %v299 = vmul.f32 %v83, %v133
  %v300 = vmul.f32 %v83, %v136
  %v301 = vadd.f32 %v297, %v299
  %v302 = vadd.f32 %v298, %v300
  %s303 = smul.f32 %s18, %s18
  %v304 = vstv %s303
  %v305 = vmul.f32 %v304, %v82
  %v306 = vmul.f32 %v305, %v133
  %v307 = vmul.f32 %v305, %v136
  %v308 = vadd.f32 %v297, %v306
  %v309 = vadd.f32 %v298, %v307
  %v310 = vadd.f32 %v308, 1e-05
  %v311 = vadd.f32 %v309, 1e-05
  %v312 = vrcp.pop %v310
  %v313 = vmul.f32 1.0, %v312
  %v314 = vrcp.pop %v311
  %v315 = vmul.f32 1.0, %v314
  %v316 = vmul.f32 %v85, %v285
  %v317 = vmul.f32 %v85, %v290
  %v318 = vmul.f32 %v301, %v102
  %v319 = vmul.f32 %v302, %v102
  %v320 = vsub.f32 %v316, %v318
  %v321 = vsub.f32 %v317, %v319
  %v322 = vmul.f32 %v320, %v313
  %v323 = vmul.f32 %v321, %v315
  %v324 = vmul.f32 %v301, %v301
  %v325 = vmul.f32 %v302, %v302
  %v326 = vmul.f32 %v324, %v82
  %v327 = vmul.f32 %v325, %v82
  %v328 = vmul.f32 %v301, 2.0
  %v329 = vmul.f32 %v302, 2.0
  %v330 = vmul.f32 %v328, %v85
  %v331 = vmul.f32 %v329, %v85
  %v332 = vmul.f32 %v330, %v210
  %v333 = vmul.f32 %v331, %v215
  %v334 = vsub.f32 %v326, %v332
  %v335 = vsub.f32 %v327, %v333
  %v336 = vmul.f32 %v85, %v85
  %v337 = vmul.f32 %v336, %v133
  %v338 = vmul.f32 %v336, %v136
  %v339 = vadd.f32 %v334, %v337
  %v340 = vadd.f32 %v335, %v338
  %v341 = vmul.f32 %v313, %v313
  %v342 = vmul.f32 %v315, %v315
  %v343 = vmul.f32 %v339, %v341
  %v344 = vmul.f32 %v340, %v342
  %s345 = smul.f32 %s27, 2.0
  %v346 = vstv %s345
  %v347 = vmul.f32 %v346, %v322
  %v348 = vmul.f32 %v346, %v323
  %v349 = vrsqrt.pop %v343
  %v350 = vmul.f32 %v343, %v349
  %vm351 = vcmp.eq.f32.partialorder %v343, inf
  %v352 = vsel %vm351, %v343, %v350
  %vm353 = vcmp.eq.f32.partialorder %v343, 0.0
  %v354 = vand.u32 %v343, 2147483648
  %v355 = vsel %vm353, %v354, %v352
  %v356 = vrsqrt.pop %v344
  %v357 = vmul.f32 %v344, %v356
  %vm358 = vcmp.eq.f32.partialorder %v344, inf
  %v359 = vsel %vm358, %v344, %v357
  %vm360 = vcmp.eq.f32.partialorder %v344, 0.0
  %v361 = vand.u32 %v344, 2147483648
  %v362 = vsel %vm360, %v361, %v359
  %v363 = vmul.f32 %v83, %v343
  %v364 = vmul.f32 %v83, %v344
  %v365 = vsub.f32 1.0, %v363
  %v366 = vsub.f32 1.0, %v364
  %v367 = vmul.f32 %v355, %v365
  %v368 = vmul.f32 %v362, %v366
  %v369 = vrcp.pop %v367
  %v370 = vmul.f32 %v347, %v369
  %v371 = vrcp.pop %v368
  %v372 = vmul.f32 %v348, %v371
  %v373 = vmul.f32 %v370, %v370
  %v374 = vmul.f32 %v372, %v372
  %v375 = vadd.f32 %v373, 1.0
  %v376 = vadd.f32 %v374, 1.0
  %v377 = vrsqrt.pop %v375
  %v378 = vmul.f32 %v375, %v377
  %vm379 = vcmp.eq.f32.partialorder %v375, inf
  %v380 = vsel %vm379, %v375, %v378
  %vm381 = vcmp.eq.f32.partialorder %v375, 0.0
  %v382 = vand.u32 %v375, 2147483648
  %v383 = vsel %vm381, %v382, %v380
  %v384 = vrsqrt.pop %v376
  %v385 = vmul.f32 %v376, %v384
  %vm386 = vcmp.eq.f32.partialorder %v376, inf
  %v387 = vsel %vm386, %v376, %v385
  %vm388 = vcmp.eq.f32.partialorder %v376, 0.0
  %v389 = vand.u32 %v376, 2147483648
  %v390 = vsel %vm388, %v389, %v387
  %v391 = vadd.f32 %v370, %v383
  %v392 = vadd.f32 %v372, %v390
  %v393 = vlog2.pop %v391
  %v394 = vmul.f32 %v393, 0.6931472
  %v395 = vlog2.pop %v392
  %v396 = vmul.f32 %v395, 0.6931472
  %v397 = vmul.f32 %v127, %v394
  %v398 = vmul.f32 %v127, %v396
  %399 = vst [vmem:[%s4] sm:$0xff] %v397
  %400 = vst [vmem:[%s4 + $0x8] sm:$0xff] %v398
  // Predicated region
  $region18: #{poincare_mlr_forward.1} parent=0 // pred_check
    _
  $region19: #{poincare_mlr_forward.1} parent=0 // pred_check_branch
    %402 = sbr.rel (0) target = $region21
  $region20: #{poincare_mlr_forward.1} parent=0 // pred_region
    _
  $region21: #{poincare_mlr_forward.1} parent=0 // pred_fallthru
    _
  // Predicated region
  $region22: #{poincare_mlr_forward.1} parent=0 // pred_check
    _
  $region23: #{poincare_mlr_forward.1} parent=0 // pred_check_branch
    %404 = sbr.rel (0) target = $region25
  $region24: #{poincare_mlr_forward.1} parent=0 // pred_region
    _
  $region25: #{poincare_mlr_forward.1} parent=0 // pred_fallthru
    _

</llo_original>
